<compile_context>
chip_gen: v5e
topology: v5e:2x2
jax: 0.10.0
libtpu: 0.0.40
codegen_flags: <defaults>
</compile_context>

<pallas_src>
import functools

import jax
import jax.numpy as jnp
from jax.experimental import pallas as pl
from jax.experimental.pallas import tpu as pltpu


def _aspect_ratio_emb_kernel(ids_ref, gate_ref, hs_ref, emb_ref, out_ref, *, is_gated):
    # ids_ref : SMEM scalar-prefetch ref with aspect_ratio_ids (used by index_maps)
    # gate_ref: SMEM (1,) float32 holding tanh(gate), precomputed in the wrapper
    # hs_ref  : VMEM (1, T, TP, H) hidden_state tile for this (batch, patch-tile)
    # emb_ref : VMEM (1, T, H) gathered embedding row (resident across patch tiles)
    emb = emb_ref[...]                                        # (1, T, H)
    if is_gated:
        # Tiny T*H row: rescale in f32, cast once to the activation dtype.
        emb = (emb.astype(jnp.float32) * gate_ref[0]).astype(hs_ref.dtype)
    else:
        emb = emb.astype(hs_ref.dtype)
    # Large add stays in native dtype; broadcast over the patch axis.
    out_ref[...] = hs_ref[...] + emb[:, :, None, :]


def _vmem_budget_bytes():
    """Generation-aware VMEM sizing (v5e/v6e: 128 MiB, v7x: 64 MiB per core)."""
    try:
        cap = int(getattr(pltpu.get_tpu_info(), "vmem_capacity_bytes"))
        if cap <= 0:
            raise ValueError
    except Exception:  # no TPU info available -> assume the smallest (v7x) VMEM
        cap = 64 * 1024 * 1024
    tile_budget = cap // 3                                   # <= ~1/3 of per-core VMEM
    vmem_limit = max(32 * 1024 * 1024,                       # avoid v5e's 16 MiB default trap
                     min(cap // 2, 64 * 1024 * 1024))
    return tile_budget, vmem_limit


def _pick_patch_tile(P, T, H, itemsize, budget_bytes, *, want_even_steps):
    """Choose the patch-axis tile TP.

    * budget-limited max:  4 * T*TP*H*itemsize <= budget (double-buffered in + out)
    * balanced:            n = cdiv(P, TP_max); TP = round_up(cdiv(P, n), align)
                           -> no degenerate near-empty tail block
    * v7x core balance:    if want_even_steps (B odd), bump n to an even count
    * alignment:           dtype sublane packing (8 f32, 16 bf16, 32 i8/fp8)
    * cap:                 512 sublanes (tiling curve flattens past that)
    """
    align = 8 * max(1, 4 // max(itemsize, 1))
    per_patch = 4 * T * H * itemsize                 # in + out, each double-buffered
    tp_max = min(P, 512, max(align, budget_bytes // max(per_patch, 1)))
    n = -(-P // tp_max)                              # cdiv
    if want_even_steps and n % 2 == 1 and n < P:
        n += 1                                       # even split across 2 TensorCores
    if n <= 1:
        return P                                     # full extent: always legal
    tp = -(-P // n)                                  # balanced tile
    tp = -(-tp // align) * align                     # round up to sublane alignment
    return min(tp, P)


def mllama_aspect_ratio_embedding(hidden_state, aspect_ratio_ids, embedding_table,
                                  gate, *, max_num_tiles, hidden_size, is_gated=True):
    """hidden_state: [B, T, P, H]; aspect_ratio_ids: [B] int; 
    embedding_table: [max_aspect_ratio_id+1, T*H]; gate: scalar or [1] float."""
    B, T, P, H = hidden_state.shape
    assert T == max_num_tiles and H == hidden_size

    # Parameter-setup glue: expose (id, tile, hidden) axes for the row gather.
    emb3 = embedding_table.reshape(-1, T, H)
    num_ids = emb3.shape[0]

    # Guard the gather: an out-of-range id would drive the index_map DMA OOB.
    # (PyTorch's nn.Embedding would raise; here we clamp instead of faulting.)
    ids = jnp.clip(aspect_ratio_ids.astype(jnp.int32), 0, num_ids - 1)

    # Hoist the scalar tanh out of the grid; accept () or (1,) shaped gate.
    gate_vec = jnp.reshape(jnp.asarray(gate, jnp.float32), (1,))
    gate_tanh = jnp.tanh(gate_vec) if is_gated else jnp.ones((1,), jnp.float32)

    tile_budget, vmem_limit = _vmem_budget_bytes()
    TP = _pick_patch_tile(P, T, H, jnp.dtype(hidden_state.dtype).itemsize,
                          tile_budget, want_even_steps=(B % 2 == 1))
    n_ptiles = pl.cdiv(P, TP)

    kernel = functools.partial(_aspect_ratio_emb_kernel, is_gated=is_gated)

    grid_spec = pltpu.PrefetchScalarGridSpec(
        num_scalar_prefetch=1,              # aspect_ratio_ids -> SMEM, feeds index_maps
        grid=(B, n_ptiles),                 # patch-tile axis innermost
        in_specs=[
            # tanh(gate) scalar in SMEM
            pl.BlockSpec(memory_space=pltpu.MemorySpace.SMEM),
            # hidden_state patch tile
            pl.BlockSpec((1, T, TP, H), lambda b, p, ids: (b, 0, p, 0)),
            # gathered embedding row: block index constant in p -> stays resident
            pl.BlockSpec((1, T, H), lambda b, p, ids: (ids[b], 0, 0)),
        ],
        out_specs=pl.BlockSpec((1, T, TP, H), lambda b, p, ids: (b, 0, p, 0)),
    )

    return pl.pallas_call(
        kernel,
        out_shape=jax.ShapeDtypeStruct(hidden_state.shape, hidden_state.dtype),
        grid_spec=grid_spec,
        # Output aliases hidden_state (operand 2 after ids, gate_tanh): same
        # block mapping, so pipelined reads/writes never conflict.  XLA copies
        # the input if the caller did not donate it -> always safe.
        input_output_aliases={2: 0},
        compiler_params=pltpu.CompilerParams(
            # No cross-iteration carry: both axes independent -> megacore-friendly.
            dimension_semantics=("parallel", "parallel"),
            vmem_limit_bytes=vmem_limit,
        ),
    )(ids, gate_tanh, hidden_state, emb3)


def _reference(hidden_state, aspect_ratio_ids, embedding_table, gate,
               max_num_tiles, hidden_size, is_gated=True):
    emb = embedding_table[aspect_ratio_ids].reshape(-1, max_num_tiles, 1, hidden_size)
    if is_gated:
        emb = emb * jnp.tanh(gate)
    return hidden_state + emb


if __name__ == "__main__":
    # Small config consistent with the module's forward.
    config = dict(max_num_tiles=4, hidden_size=32, max_aspect_ratio_id=8)
    B, P = 2, 8
    T, H = config["max_num_tiles"], config["hidden_size"]

    key = jax.random.PRNGKey(0)
    k_emb, k_hs = jax.random.split(key)

    # Deterministic parameter init (shapes per the module's __init__).
    embedding_table = 0.02 * jax.random.normal(
        k_emb, (config["max_aspect_ratio_id"] + 1, T * H), dtype=jnp.float32)
    # nn.Parameter(torch.zeros(1)) -> use a nonzero deterministic value so the
    # gated path actually exercises the compute (tanh(0) would zero it out).
    gate = jnp.array([0.5], dtype=jnp.float32)

    hidden_state = jax.random.normal(k_hs, (B, T, P, H), dtype=jnp.float32)
    aspect_ratio_ids = jnp.array([3, 1], dtype=jnp.int32)

    # Reference computed first (the kernel output aliases hidden_state).
    ref = _reference(hidden_state, aspect_ratio_ids, embedding_table, gate,
                     T, H, is_gated=True)

    out = mllama_aspect_ratio_embedding(
        hidden_state, aspect_ratio_ids, embedding_table, gate,
        max_num_tiles=T, hidden_size=H, is_gated=True)
    out = jax.block_until_ready(out)

    assert out.shape == (B, T, P, H) and out.dtype == jnp.float32
    assert jnp.allclose(out, ref, atol=1e-5, rtol=1e-5), "mismatch vs reference"
    print("KERNEL_OK")
</pallas_src>

<mosaic_0001>
module attributes {stable_mosaic.version = 11 : i64} {
  func.func @_aspect_ratio_emb_kernel(%arg0: i32, %arg1: i32, %arg2: memref<2xi32, #tpu.memory_space<smem>>, %arg3: memref<1xf32, #tpu.memory_space<smem>>, %arg4: memref<1x4x8x32xf32, #tpu.memory_space<vmem>>, %arg5: memref<1x4x32xf32, #tpu.memory_space<vmem>>, %arg6: memref<1x4x8x32xf32, #tpu.memory_space<vmem>>) attributes {dimension_semantics = [#tpu.dimension_semantics<parallel>, #tpu.dimension_semantics<parallel>], iteration_bounds = array<i64: 2, 1>, scalar_prefetch = 1 : i64, scratch_operands = 0 : i64, tpu.core_type = #tpu.core_type<tc>, window_params = [{transform_indices = @transform_0, window_bounds = array<i64: 1>}, {transform_indices = @transform_1, window_bounds = array<i64: 1, 4, 8, 32>}, {transform_indices = @transform_2, window_bounds = array<i64: 1, 4, 32>}, {transform_indices = @transform_3, window_bounds = array<i64: 1, 4, 8, 32>}]} {
    %c0 = arith.constant 0 : index
    %c0_0 = arith.constant 0 : index
    %c0_1 = arith.constant 0 : index
    %0 = vector.load %arg5[%c0, %c0_0, %c0_1] : memref<1x4x32xf32, #tpu.memory_space<vmem>>, vector<1x4x32xf32>
    %c0_2 = arith.constant 0 : index
    %1 = memref.load %arg3[%c0_2] : memref<1xf32, #tpu.memory_space<smem>>
    %2 = vector.broadcast %1 : f32 to vector<1x4x32xf32>
    %3 = arith.mulf %0, %2 : vector<1x4x32xf32>
    %c0_3 = arith.constant 0 : index
    %c0_4 = arith.constant 0 : index
    %c0_5 = arith.constant 0 : index
    %c0_6 = arith.constant 0 : index
    %4 = vector.load %arg4[%c0_3, %c0_4, %c0_5, %c0_6] : memref<1x4x8x32xf32, #tpu.memory_space<vmem>>, vector<1x4x8x32xf32>
    %5 = vector.shape_cast %3 : vector<1x4x32xf32> to vector<1x4x1x32xf32>
    %6 = vector.broadcast %5 : vector<1x4x1x32xf32> to vector<1x4x8x32xf32>
    %7 = arith.addf %4, %6 : vector<1x4x8x32xf32>
    %c0_7 = arith.constant 0 : index
    %c0_8 = arith.constant 0 : index
    %c0_9 = arith.constant 0 : index
    %c0_10 = arith.constant 0 : index
    %8 = vector.load %arg6[%c0_7, %c0_8, %c0_9, %c0_10] : memref<1x4x8x32xf32, #tpu.memory_space<vmem>>, vector<1x4x8x32xf32>
    tpu.vector_store %arg6[%c0_7, %c0_8, %c0_9, %c0_10], %7 {strides = array<i32>} : memref<1x4x8x32xf32, #tpu.memory_space<vmem>>, vector<1x4x8x32xf32>,
    return
  }
  func.func @transform_0(%arg0: i32, %arg1: i32, %arg2: memref<2xi32, #tpu.memory_space<smem>>) -> i32 {
    %c0_i32 = arith.constant 0 : i32
    %c0_i32_0 = arith.constant 0 : i32
    return %c0_i32 : i32
  }
  func.func @transform_1(%arg0: i32, %arg1: i32, %arg2: memref<2xi32, #tpu.memory_space<smem>>) -> (i32, i32, i32, i32) {
    %c0_i32 = arith.constant 0 : i32
    %c0_i32_0 = arith.constant 0 : i32
    %c0_i32_1 = arith.constant 0 : i32
    return %arg0, %c0_i32, %arg1, %c0_i32_0 : i32, i32, i32, i32
  }
  func.func @transform_2(%arg0: i32, %arg1: i32, %arg2: memref<2xi32, #tpu.memory_space<smem>>) -> (i32, i32, i32) {
    %0 = arith.index_cast %arg0 : i32 to index
    %1 = memref.load %arg2[%0] : memref<2xi32, #tpu.memory_space<smem>>
    %c0_i32 = arith.constant 0 : i32
    %c0_i32_0 = arith.constant 0 : i32
    %c0_i32_1 = arith.constant 0 : i32
    return %1, %c0_i32, %c0_i32_0 : i32, i32, i32
  }
  func.func @transform_3(%arg0: i32, %arg1: i32, %arg2: memref<2xi32, #tpu.memory_space<smem>>) -> (i32, i32, i32, i32) {
    %c0_i32 = arith.constant 0 : i32
    %c0_i32_0 = arith.constant 0 : i32
    %c0_i32_1 = arith.constant 0 : i32
    return %arg0, %c0_i32, %arg1, %c0_i32_0 : i32, i32, i32, i32
  }
}

</mosaic_0001>

<llo_original>
// kernel: tpu_custom_call.1
$region0: #{tpu_custom_call.1}
  #allocation0 [shape = 'u32[]', space=smem, size = 0x4, offset = 0x4, fixed_abs, tag = 'smem constant byte address 0x4 - core index']
  #allocation1 [shape = 'u32[72,128]{1,0:T(1,128)}', space=vmem, size = 0x9000, scoped, tag = 'internal scratch']
  #allocation2 [shape = 's32[1]{0}', space=sflag, size = 0x4, scoped, tag = 'scoped memory for tpu_custom_call.1']
  #allocation3 [shape = 'u8[512]{0}', space=smem, size = 0x200, scoped, tag = 'prefetched SMEM operand 0']
  #allocation4 [shape = 'f32[1]{0:T(128)S(6)}', space=smem, size = 0x200, scoped, tag = 'scoped memory for tpu_custom_call.1']
  %s0 = inlined_call_operand.vmem [shape: s32[2], index: 0, kind: input, shape index: {}]
  %s1 = inlined_call_operand.<no memory space> [shape: f32[1], index: 1, kind: input, shape index: {}]
  %s2 = inlined_call_operand.hbm [shape: f32[2,4,8,32], index: 2, kind: input, shape index: {}, may-alias: {2,4}]
  %s3 = inlined_call_operand.vmem [shape: f32[9,4,32], index: 3, kind: input, shape index: {}]
  %s4 = inlined_call_operand.hbm [shape: f32[2,4,8,32], index: 4, kind: output, shape index: {}, may-alias: {2,4}]
  %s5 = sld [smem:[#allocation0]]
  $region49: #{tpu_custom_call.1} parent=0
    _
  %s7 = ssub.s32 1, %s5
  %s8 = scalar_select 0, %s7, %s5
  %s10 = sshll.u32 %s0, 4
  %s11 = int_to_ptr.vmem [resolvable:$true] %s10
  %13 = dma.vmem_to_smem %s11, 16, [#allocation3], [#allocation2]
  %14 = sst [smem:[#allocation4]] %s1
  %16 = dma.done [#allocation2], 16
  %17 = sfence
  $region1: #{tpu_custom_call.1} parent=0
    #allocation5 [shape = 'u8[32768]{0}', space=vmem, size = 0x8000, scoped, tag = 'input window, operand 2']
    #allocation6 [shape = 's32[2]{0}', space=sflag, size = 0x8, scoped, tag = 'scoped memory for tpu_custom_call.1']
    #allocation7 [shape = 's32[2]{0}', space=sflag, size = 0x8, scoped, tag = 'scoped memory for tpu_custom_call.1']
    #allocation8 [shape = 'u8[32768]{0}', space=vmem, size = 0x8000, scoped, tag = 'output window, operand 0']
    %18 = vsyncpa [#allocation6], 0
    %s19 = scalar_lea.sflag [#allocation6], 1
    %20 = vsyncpa %s19, 0
    %21 = vsyncpa [#allocation7], 0
    %s22 = scalar_lea.sflag [#allocation7], 1
    %23 = vsyncpa %s22, 0
    loop: start=0, step=1, limit=4
    $region2: #{tpu_custom_call.1} parent=1 // loop_pre_header
      _
    $region3: #{tpu_custom_call.1} parent=1 // loop_header
      %s25 = sphi 0, %s29
      %p26 = scmp.ge.s32.totalorder %s25, 4
      %s32 = sphi 0, %s44
      %s33 = sphi 0, %s40
      %s34 = sphi 0, %s32
      %s35 = sphi 0, %s33
      %s36 = sphi 0, %s34
      %s37 = sphi 0, %s35
      %s45 = sphi 0, %s45
      %s47 = sphi 0, %s45
      %s48 = sphi 0, %s47
      %s62 = sphi 0, %s48
      %s70 = sphi 0, %s72
      %s73 = sphi 0, %s70
      %s74 = sphi 0, %s73
      %s90 = sphi 0, %s74
      %s98 = sphi 0, %s100
      %s101 = sphi 0, %s98
      %s102 = sphi 0, %s101
      %s118 = sphi 0, %s102
      %s126 = sphi 0, %s128
      %s129 = sphi 0, %s126
      %s130 = sphi 0, %s129
      %s146 = sphi 0, %s130
    $region4: #{tpu_custom_call.1} parent=1 // loop_header_branch
      %28 = sbr.rel (%p26) target = $region8
    $region5: #{tpu_custom_call.1} parent=1 // loop_body
      %s30 = ssub.s32 %s25, 1
      %s31 = ssub.s32 %s25, 2
      %s38 = sadd.s32 1, %s33
      %p39 = scmp.ge.s32.totalorder %s38, 1
      %s40 = scalar_select %p39, 0, %s38
      %s41 = sadd.s32 1, %s32
      %s42 = scalar_select %p39, %s41, %s32
      %p43 = scmp.ge.s32.totalorder %s42, 2
      %s44 = scalar_select %p43, 0, %s42
      %s46 = sadd.s32 %s45, 1
      %p49 = scmp.eq.s32.totalorder %s25, 1
      %p50 = scmp.ne.s32.totalorder %s45, %s47
      %p51 = scmp.eq.s32.totalorder %s25, 0
      %p52 = por %p50, %p51
      %p53 = scmp.ne.s32.totalorder %s45, %s47
      %p54 = scmp.eq.s32.totalorder %s30, 1
      %p55 = por %p53, %p54
      %p56 = scmp.ne.s32.totalorder %s47, %s48
      %p57 = scmp.eq.s32.totalorder %s30, 0
      %p58 = por %p56, %p57
      %p59 = scmp.ne.s32.totalorder %s47, %s48
      %p60 = scmp.eq.s32.totalorder %s31, 1
      %p61 = por %p59, %p60
      %p63 = scmp.ne.s32.totalorder %s48, %s62
      %p64 = scmp.eq.s32.totalorder %s31, 0
      %p65 = por %p63, %p64
      %s66 = ssub.s32 %s32, %s44
      %s67 = ssub.s32 %s33, %s40
      %s68 = sor.u32 %s66, %s67
      %p69 = scmp.eq.s32.totalorder %s68, 0
      %s71 = sadd.s32 %s70, 1
      %s72 = scalar_select %p69, %s70, %s71
      %p75 = pneg %p69
      %p76 = scmp.eq.s32.totalorder %s25, 1
      %p77 = por %p75, %p76
      %p78 = scmp.ne.s32.totalorder %s70, %s73
      %p79 = scmp.eq.s32.totalorder %s25, 0
      %p80 = por %p78, %p79
      %p81 = scmp.ne.s32.totalorder %s70, %s73
      %p82 = scmp.eq.s32.totalorder %s30, 1
      %p83 = por %p81, %p82
      %p84 = scmp.ne.s32.totalorder %s73, %s74
      %p85 = scmp.eq.s32.totalorder %s30, 0
      %p86 = por %p84, %p85
      %p87 = scmp.ne.s32.totalorder %s73, %s74
      %p88 = scmp.eq.s32.totalorder %s31, 1
      %p89 = por %p87, %p88
      %p91 = scmp.ne.s32.totalorder %s74, %s90
      %p92 = scmp.eq.s32.totalorder %s31, 0
      %p93 = por %p91, %p92
      %s94 = sld [smem:[#allocation3 + %s32]]
      %s95 = sld [smem:[#allocation3 + %s44]]
      %s96 = ssub.s32 %s94, %s95
      %p97 = scmp.eq.s32.totalorder %s96, 0
      %s99 = sadd.s32 %s98, 1
      %s100 = scalar_select %p97, %s98, %s99
      %p103 = pneg %p97
      %p104 = scmp.eq.s32.totalorder %s25, 1
      %p105 = por %p103, %p104
      %p106 = scmp.ne.s32.totalorder %s98, %s101
      %p107 = scmp.eq.s32.totalorder %s25, 0
      %p108 = por %p106, %p107
      %p109 = scmp.ne.s32.totalorder %s98, %s101
      %p110 = scmp.eq.s32.totalorder %s30, 1
      %p111 = por %p109, %p110
      %p112 = scmp.ne.s32.totalorder %s101, %s102
      %p113 = scmp.eq.s32.totalorder %s30, 0
      %p114 = por %p112, %p113
      %p115 = scmp.ne.s32.totalorder %s101, %s102
      %p116 = scmp.eq.s32.totalorder %s31, 1
      %p117 = por %p115, %p116
      %p119 = scmp.ne.s32.totalorder %s102, %s118
      %p120 = scmp.eq.s32.totalorder %s31, 0
      %p121 = por %p119, %p120
      %s122 = ssub.s32 %s32, %s44
      %s123 = ssub.s32 %s33, %s40
      %s124 = sor.u32 %s122, %s123
      %p125 = scmp.eq.s32.totalorder %s124, 0
      %s127 = sadd.s32 %s126, 1
      %s128 = scalar_select %p125, %s126, %s127
      %p131 = pneg %p125
      %p132 = scmp.eq.s32.totalorder %s25, 1
      %p133 = por %p131, %p132
      %p134 = scmp.ne.s32.totalorder %s126, %s129
      %p135 = scmp.eq.s32.totalorder %s25, 0
      %p136 = por %p134, %p135
      %p137 = scmp.ne.s32.totalorder %s126, %s129
      %p138 = scmp.eq.s32.totalorder %s30, 1
      %p139 = por %p137, %p138
      %p140 = scmp.ne.s32.totalorder %s129, %s130
      %p141 = scmp.eq.s32.totalorder %s30, 0
      %p142 = por %p140, %p141
      %p143 = scmp.ne.s32.totalorder %s129, %s130
      %p144 = scmp.eq.s32.totalorder %s31, 1
      %p145 = por %p143, %p144
      %p147 = scmp.ne.s32.totalorder %s130, %s146
      %p148 = scmp.eq.s32.totalorder %s31, 0
      %p149 = por %p147, %p148
      %p150 = scmp.le.s32.totalorder 1, %s25
      %p151 = scmp.lt.s32.totalorder %s25, 3
      %p152 = pnand %p150, %p151
      %p153 = pneg %p152
      // Predicated region
      $region9: #{tpu_custom_call.1} parent=5 // pred_check
        _
      $region10: #{tpu_custom_call.1} parent=5 // pred_check_branch
        %155 = sbr.rel (%p152) target = $region12
      $region11: #{tpu_custom_call.1} parent=5 // pred_region
        %s156 = ssub.s32 %s25, 1
        // Predicated region
        $region13: #{tpu_custom_call.1} parent=11 // pred_check
          %p157 = pneg %p58
        $region14: #{tpu_custom_call.1} parent=11 // pred_check_branch
          %159 = sbr.rel (%p157) target = $region16
        $region15: #{tpu_custom_call.1} parent=11 // pred_region
          _
        $region16: #{tpu_custom_call.1} parent=11 // pred_fallthru
          _
      $region12: #{tpu_custom_call.1} parent=5 // pred_fallthru
        _
      %p160 = scmp.lt.s32.totalorder %s25, 2
      // Predicated region
      $region17: #{tpu_custom_call.1} parent=5 // pred_check
        %p161 = pneg %p160
      $region18: #{tpu_custom_call.1} parent=5 // pred_check_branch
        %163 = sbr.rel (%p161) target = $region20
      $region19: #{tpu_custom_call.1} parent=5 // pred_region
        // Predicated region
        $region21: #{tpu_custom_call.1} parent=19 // pred_check
          %p164 = pneg %p80
        $region22: #{tpu_custom_call.1} parent=19 // pred_check_branch
          %166 = sbr.rel (%p164) target = $region24
        $region23: #{tpu_custom_call.1} parent=19 // pred_region
          %s167 = sand.u32 %s70, 1
          %s168 = scalar_lea.sflag [#allocation6], %s167
          %s169 = sand.u32 %s70, 1
          %s170 = smul.addr %s169, 32
          %s171 = scalar_lea.vmem [#allocation5], %s170
          %173 = vsyncadd %s168, 0
          %s174 = smul.addr %s32, 4
          %s175 = sadd.s32 %s33, %s174
          %s176 = smul.addr %s175, 8
          %s177 = scalar_lea.hbm %s2, %s176
          %s178 = sshll.u32 %s177, 4
          %s179 = int_to_ptr.hbm [resolvable:$true] %s178
          %s180 = sshll.u32 %s171, 4
          %s181 = int_to_ptr.vmem [resolvable:$true] %s180
          %186 = dma.hbm_to_vmem [thread:$0]  %s179, 512, %s181, %s168, 128, 128, 8
        $region24: #{tpu_custom_call.1} parent=19 // pred_fallthru
          _
        // Predicated region
        $region25: #{tpu_custom_call.1} parent=19 // pred_check
          %p187 = pneg %p108
        $region26: #{tpu_custom_call.1} parent=19 // pred_check_branch
          %189 = sbr.rel (%p187) target = $region28
        $region27: #{tpu_custom_call.1} parent=19 // pred_region
          %s190 = sld [smem:[#allocation3 + %s32]]
          %p191 = scmp.lt.s32.totalorder %s190, 8
          %s192 = scalar_select %p191, %s190, 8
          %s193 = smul.addr %s192, 4
          %s194 = scalar_lea.vmem %s3, %s193
          %s195 = sld [smem:[#allocation3 + %s32]]
        $region28: #{tpu_custom_call.1} parent=19 // pred_fallthru
          _
      $region20: #{tpu_custom_call.1} parent=5 // pred_fallthru
        _
      %p196 = scmp.le.s32.totalorder 1, %s25
      %p197 = scmp.lt.s32.totalorder %s25, 3
      %p198 = pnand %p196, %p197
      %p199 = pneg %p198
      // Predicated region
      $region29: #{tpu_custom_call.1} parent=5 // pred_check
        _
      $region30: #{tpu_custom_call.1} parent=5 // pred_check_branch
        %201 = sbr.rel (%p198) target = $region32
      $region31: #{tpu_custom_call.1} parent=5 // pred_region
        %s202 = ssub.s32 %s25, 1
        %s203 = sand.u32 %s73, 1
        %s204 = scalar_lea.sflag [#allocation6], %s203
        %s205 = sand.u32 %s73, 1
        %s206 = smul.addr %s205, 32
        %s207 = scalar_lea.vmem [#allocation5], %s206
        // Predicated region
        $region33: #{tpu_custom_call.1} parent=31 // pred_check
          %p208 = pneg %p86
        $region34: #{tpu_custom_call.1} parent=31 // pred_check_branch
          %210 = sbr.rel (%p208) target = $region36
        $region35: #{tpu_custom_call.1} parent=31 // pred_region
          %212 = dma.done %s204, 512
        $region36: #{tpu_custom_call.1} parent=31 // pred_fallthru
          _
        %p213 = pneg %p58
        %p214 = pneg %p55
        %s215 = sand.u32 %s73, 1
        %s216 = scalar_lea.sflag [#allocation6], %s215
        %s217 = sand.u32 %s73, 1
        %s218 = smul.addr %s217, 32
        %s219 = scalar_lea.vmem [#allocation5], %s218
        %p220 = pneg %p86
        %p221 = pneg %p83
        %s222 = sld [smem:[#allocation3 + %s34]]
        %p223 = scmp.lt.s32.totalorder %s222, 8
        %s224 = scalar_select %p223, %s222, 8
        %s225 = smul.addr %s224, 4
        %s226 = scalar_lea.vmem %s3, %s225
        %p227 = pneg %p114
        %p228 = pneg %p111
        %p229 = pneg %p142
        %p230 = pneg %p139
        %s231 = sand.u32 %s129, 1
        %s232 = scalar_lea.sflag [#allocation7], %s231
        %s233 = sand.u32 %s129, 1
        %s234 = smul.addr %s233, 32
        %s235 = scalar_lea.vmem [#allocation8], %s234
        %s236 = sld [smem:[#allocation3 + %s34]]
        %p237 = scmp.lt.s32.totalorder %s236, 8
        %s238 = scalar_select %p237, %s236, 8
        %s239 = smul.addr %s238, 4
        %s240 = scalar_lea.vmem %s3, %s239
        %s241 = sld [smem:[#allocation3 + %s34]]
        %v242 = vld [vmem:[%s240] sm:$0xf]
        %s243 = sld [smem:[#allocation4]]
        %v244 = vstv %s243
        %v245 = vmul.f32 %v242, %v244
        %v246 = vld [vmem:[%s207] sm:$0xff]
        %v247 = vld [vmem:[%s207 + $0x8] sm:$0xff]
        %v248 = vld [vmem:[%s207 + $0x10] sm:$0xff]
        %v249 = vld [vmem:[%s207 + $0x18] sm:$0xff]
        %v251 = vrot.slane %v245, 1
        %v252 = vrot.slane %v245, 2
        %v253 = vrot.slane %v245, 3
        %v254 = vperm.slane %v245, 0
        %v255 = vperm.slane %v251, 0
        %v256 = vperm.slane %v252, 0
        %v257 = vperm.slane %v253, 0
        %v262 = vadd.f32 %v246, %v254
        %v263 = vadd.f32 %v247, %v255
        %v264 = vadd.f32 %v248, %v256
        %v265 = vadd.f32 %v249, %v257
        %vm266 = vcmask 261120
        %267 = vst.msk [vmem:[%s235] sm:$0xff] %vm266, %v262
        %268 = vst.msk [vmem:[%s235 + $0x8] sm:$0xff] %vm266, %v263
        %269 = vst.msk [vmem:[%s235 + $0x10] sm:$0xff] %vm266, %v264
        %270 = vst.msk [vmem:[%s235 + $0x18] sm:$0xff] %vm266, %v265
        %s271 = sand.u32 %s129, 1
        %s272 = scalar_lea.sflag [#allocation7], %s271
        %s273 = sand.u32 %s129, 1
        %s274 = smul.addr %s273, 32
        %s275 = scalar_lea.vmem [#allocation8], %s274
        // Predicated region
        $region37: #{tpu_custom_call.1} parent=31 // pred_check
          %p276 = pneg %p139
        $region38: #{tpu_custom_call.1} parent=31 // pred_check_branch
          %278 = sbr.rel (%p276) target = $region40
        $region39: #{tpu_custom_call.1} parent=31 // pred_region
          %280 = vsyncadd %s272, 0
          %s281 = smul.addr %s34, 4
          %s282 = sadd.s32 %s35, %s281
          %s283 = smul.addr %s282, 8
          %s284 = scalar_lea.hbm %s4, %s283
          %s285 = sshll.u32 %s275, 4
          %s286 = int_to_ptr.vmem [resolvable:$true] %s285
          %s287 = sshll.u32 %s284, 4
          %s288 = int_to_ptr.hbm [resolvable:$true] %s287
          %293 = dma.vmem_to_hbm [thread:$0]  %s286, 512, %s288, %s272, 128, 128, 8
        $region40: #{tpu_custom_call.1} parent=31 // pred_fallthru
          _
      $region32: #{tpu_custom_call.1} parent=5 // pred_fallthru
        _
      %p294 = scmp.le.s32.totalorder 2, %s25
      // Predicated region
      $region41: #{tpu_custom_call.1} parent=5 // pred_check
        %p295 = pneg %p294
      $region42: #{tpu_custom_call.1} parent=5 // pred_check_branch
        %297 = sbr.rel (%p295) target = $region44
      $region43: #{tpu_custom_call.1} parent=5 // pred_region
        %s298 = ssub.s32 %s25, 2
        // Predicated region
        $region45: #{tpu_custom_call.1} parent=43 // pred_check
          %p299 = pneg %p145
        $region46: #{tpu_custom_call.1} parent=43 // pred_check_branch
          %301 = sbr.rel (%p299) target = $region48
        $region47: #{tpu_custom_call.1} parent=43 // pred_region
          %s302 = sand.u32 %s130, 1
          %s303 = scalar_lea.sflag [#allocation7], %s302
          %s304 = sand.u32 %s130, 1
          %s305 = smul.addr %s304, 32
          %s306 = scalar_lea.vmem [#allocation8], %s305
          %308 = dma.done %s303, 512
        $region48: #{tpu_custom_call.1} parent=43 // pred_fallthru
          _
      $region44: #{tpu_custom_call.1} parent=5 // pred_fallthru
        _
    $region6: #{tpu_custom_call.1} parent=1 // loop_footer
      %s29 = sadd.s32 1, %s25
    $region7: #{tpu_custom_call.1} parent=1 // loop_footer_branch
      %24 = sbr.rel target = $region3
    $region8: #{tpu_custom_call.1} parent=1 // loop_exit
      _
    %309 = vsyncpa [#allocation6], 1
    %s310 = scalar_lea.sflag [#allocation6], 1
    %311 = vsyncpa %s310, 1
    %312 = vsyncpa [#allocation7], 1
    %s313 = scalar_lea.sflag [#allocation7], 1
    %314 = vsyncpa %s313, 1

</llo_original>
